<compile_context>
chip_gen: v7x
topology: tpu7x:2x2x1
jax: 0.10.0
libtpu: 0.0.40
codegen_flags: <defaults>
</compile_context>

<pallas_src>
import jax
import jax.numpy as jnp
from jax.experimental import pallas as pl
from jax.experimental.pallas import tpu as pltpu


def _bci_kernel(x_ref, w1_ref, b1_ref, w2_ref, b2_ref, o_ref):
    # Hidden layer: (tile_B, D_in)bf16 @ (D_in, H)bf16 -> f32 accumulate (MXU).
    h = jnp.dot(x_ref[...], w1_ref[...], preferred_element_type=jnp.float32)
    h = h + b1_ref[...]                  # (1, H) f32 bias broadcast over batch
    h = jnp.maximum(h, 0.0)              # ReLU on VPU (f32)
    # Output layer H -> 1: lane multiply + cross-lane sum (VPU + XLU) instead
    # of a degenerate N=1 MXU matmul.
    logits = jnp.sum(h * w2_ref[...], axis=-1, keepdims=True) + b2_ref[...]
    o_ref[...] = jax.nn.sigmoid(logits).astype(o_ref.dtype)   # EUP exp/recip


def bci_forward(x, w1, b1, w2, b2, *, tile_b=1024):
    """x: [B, input_size] f32; w1: [input_size, H]; b1: [1, H];
    w2: [H, 1]; b2: [1, 1]  ->  [B, 1] float32."""
    B, d_in = x.shape
    H = w1.shape[1]

    # bf16 only for the MXU operands / HBM x-stream; everything else f32.
    x_bf16 = x.astype(jnp.bfloat16)
    w1_bf16 = w1.astype(jnp.bfloat16)
    b1_row = jnp.reshape(b1, (1, H)).astype(jnp.float32)
    w2_row = jnp.reshape(w2, (1, H)).astype(jnp.float32)
    b2_11 = jnp.reshape(b2, (1, 1)).astype(jnp.float32)

    # Tile the batch: tile_b a multiple of 8, capped, then pad B up to a
    # whole number of tiles (padded rows are discarded after the call).
    # tile_b=1024 keeps x double-buffers tiny even under v7x's 64 MiB VMEM.
    min_tile = ((B + 7) // 8) * 8
    tile_b = max(8, min(((tile_b + 7) // 8) * 8, min_tile))
    b_pad = ((B + tile_b - 1) // tile_b) * tile_b
    if b_pad != B:
        x_bf16 = jnp.pad(x_bf16, ((0, b_pad - B), (0, 0)))
    n_tiles = b_pad // tile_b

    cost = pl.CostEstimate(
        flops=2 * b_pad * d_in * H + 2 * b_pad * H,
        transcendentals=b_pad,
        bytes_accessed=b_pad * d_in * 2 + d_in * H * 2 + 4 * H + b_pad * 4,
    )

    out = pl.pallas_call(
        _bci_kernel,
        out_shape=jax.ShapeDtypeStruct((b_pad, 1), jnp.float32),
        grid=(n_tiles,),
        in_specs=[
            pl.BlockSpec((tile_b, d_in), lambda i: (i, 0)),   # x: streamed tiles
            pl.BlockSpec((d_in, H), lambda i: (0, 0)),        # w1: VMEM-resident
            pl.BlockSpec((1, H), lambda i: (0, 0)),           # b1: VMEM-resident
            pl.BlockSpec((1, H), lambda i: (0, 0)),           # w2 row: resident
            pl.BlockSpec((1, 1), lambda i: (0, 0)),           # b2: resident
        ],
        out_specs=pl.BlockSpec((tile_b, 1), lambda i: (i, 0)),
        compiler_params=pltpu.CompilerParams(
            dimension_semantics=("parallel",),
        ),
        cost_estimate=cost,
    )(x_bf16, w1_bf16, b1_row, w2_row, b2_11)

    return out[:B]


def init_params(key, input_size, hidden_size):
    """Deterministic synthetic parameters with PyTorch-Linear-like uniform init."""
    k1, k2, k3, k4 = jax.random.split(key, 4)
    bound1 = 1.0 / jnp.sqrt(input_size)
    bound2 = 1.0 / jnp.sqrt(hidden_size)
    # Stored already transposed to [in, out] for row-major matmul in the kernel.
    w1 = jax.random.uniform(k1, (input_size, hidden_size), jnp.float32,
                            -bound1, bound1)
    b1 = jax.random.uniform(k2, (1, hidden_size), jnp.float32, -bound1, bound1)
    w2 = jax.random.uniform(k3, (hidden_size, 1), jnp.float32, -bound2, bound2)
    b2 = jax.random.uniform(k4, (1, 1), jnp.float32, -bound2, bound2)
    return w1, b1, w2, b2


if __name__ == "__main__":
    key = jax.random.PRNGKey(0)
    kx, kp = jax.random.split(key)

    batch = 8
    input_size = 16
    hidden_size = 32

    x = jax.random.normal(kx, (batch, input_size), jnp.float32)
    w1, b1, w2, b2 = init_params(kp, input_size, hidden_size)

    y = bci_forward(x, w1, b1, w2, b2)
    y = jax.block_until_ready(y)
    assert y.shape == (batch, 1)

    # Reference matching the kernel datapath (bf16 MXU operands, f32 accum).
    ref_bf16 = jax.nn.sigmoid(
        jnp.maximum(
            jnp.dot(x.astype(jnp.bfloat16), w1.astype(jnp.bfloat16),
                    preferred_element_type=jnp.float32) + b1, 0.0) @ w2 + b2)
    assert jnp.allclose(y, ref_bf16, atol=1e-5, rtol=1e-5)

    # Pure-f32 reference (same math as the PyTorch forward); loose tolerance
    # accounts for the bf16 cast of the MXU operands.
    ref_f32 = jax.nn.sigmoid(jnp.maximum(x @ w1 + b1, 0.0) @ w2 + b2)
    assert jnp.allclose(y, ref_f32, atol=2e-2, rtol=2e-2)

    print("KERNEL_OK")
</pallas_src>

<mosaic_0001>
module attributes {stable_mosaic.version = 11 : i64} {
  func.func @_bci_kernel(%arg0: i32, %arg1: memref<8x16xbf16, #tpu.memory_space<vmem>>, %arg2: memref<16x32xbf16, #tpu.memory_space<vmem>>, %arg3: memref<1x32xf32, #tpu.memory_space<vmem>>, %arg4: memref<1x32xf32, #tpu.memory_space<vmem>>, %arg5: memref<1x1xf32, #tpu.memory_space<vmem>>, %arg6: memref<8x1xf32, #tpu.memory_space<vmem>>) attributes {dimension_semantics = [#tpu.dimension_semantics<parallel>], iteration_bounds = array<i64: 1>, scalar_prefetch = 0 : i64, scratch_operands = 0 : i64, tpu.core_type = #tpu.core_type<tc>, window_params = [{transform_indices = @transform_0, window_bounds = array<i64: 8, 16>}, {pipeline_mode = #tpu.pipeline_mode<synchronous>, transform_indices = @transform_1, window_bounds = array<i64: 16, 32>}, {pipeline_mode = #tpu.pipeline_mode<synchronous>, transform_indices = @transform_2, window_bounds = array<i64: 1, 32>}, {pipeline_mode = #tpu.pipeline_mode<synchronous>, transform_indices = @transform_3, window_bounds = array<i64: 1, 32>}, {pipeline_mode = #tpu.pipeline_mode<synchronous>, transform_indices = @transform_4, window_bounds = array<i64: 1, 1>}, {transform_indices = @transform_5, window_bounds = array<i64: 8, 1>}]} {
    %c0 = arith.constant 0 : index
    %c0_0 = arith.constant 0 : index
    %0 = vector.load %arg1[%c0, %c0_0] : memref<8x16xbf16, #tpu.memory_space<vmem>>, vector<8x16xbf16>
    %c0_1 = arith.constant 0 : index
    %c0_2 = arith.constant 0 : index
    %1 = vector.load %arg2[%c0_1, %c0_2] : memref<16x32xbf16, #tpu.memory_space<vmem>>, vector<16x32xbf16>
    %cst = arith.constant dense<0.000000e+00> : vector<8x32xf32>
    %2 = tpu.matmul %0, %1, %cst {dimension_numbers = #tpu.dot_dimension_numbers<[1], [0], [0], [1], [0, 0, 1, 1], [], []>} : vector<8x16xbf16>, vector<16x32xbf16>, vector<8x32xf32> -> vector<8x32xf32>
    %c0_3 = arith.constant 0 : index
    %c0_4 = arith.constant 0 : index
    %3 = vector.load %arg3[%c0_3, %c0_4] : memref<1x32xf32, #tpu.memory_space<vmem>>, vector<1x32xf32>
    %4 = vector.broadcast %3 : vector<1x32xf32> to vector<8x32xf32>
    %5 = arith.addf %2, %4 : vector<8x32xf32>
    %cst_5 = arith.constant 0.000000e+00 : f32
    %6 = vector.broadcast %cst_5 : f32 to vector<8x32xf32>
    %7 = arith.maximumf %5, %6 : vector<8x32xf32>
    %c0_6 = arith.constant 0 : index
    %c0_7 = arith.constant 0 : index
    %8 = vector.load %arg4[%c0_6, %c0_7] : memref<1x32xf32, #tpu.memory_space<vmem>>, vector<1x32xf32>
    %9 = vector.broadcast %8 : vector<1x32xf32> to vector<8x32xf32>
    %10 = arith.mulf %7, %9 : vector<8x32xf32>
    %cst_8 = arith.constant dense<0.000000e+00> : vector<8xf32>
    %11 = vector.multi_reduction <add>, %10, %cst_8 [1] : vector<8x32xf32> to vector<8xf32>
    %12 = vector.shape_cast %11 : vector<8xf32> to vector<8x1xf32>
    %c0_9 = arith.constant 0 : index
    %c0_10 = arith.constant 0 : index
    %13 = vector.load %arg5[%c0_9, %c0_10] : memref<1x1xf32, #tpu.memory_space<vmem>>, vector<1x1xf32>
    %14 = vector.broadcast %13 : vector<1x1xf32> to vector<8x1xf32>
    %15 = arith.addf %12, %14 : vector<8x1xf32>
    %16 = arith.negf %15 : vector<8x1xf32>
    %17 = math.exp %16 : vector<8x1xf32>
    %cst_11 = arith.constant 1.000000e+00 : f32
    %18 = vector.broadcast %cst_11 : f32 to vector<8x1xf32>
    %19 = arith.addf %18, %17 : vector<8x1xf32>
    %20 = arith.divf %18, %19 : vector<8x1xf32>
    %c0_12 = arith.constant 0 : index
    %c0_13 = arith.constant 0 : index
    %21 = vector.load %arg6[%c0_12, %c0_13] : memref<8x1xf32, #tpu.memory_space<vmem>>, vector<8x1xf32>
    tpu.vector_store %arg6[%c0_12, %c0_13], %20 {strides = array<i32>} : memref<8x1xf32, #tpu.memory_space<vmem>>, vector<8x1xf32>,
    return
  }
  func.func @transform_0(%arg0: i32) -> (i32, i32) {
    %c0_i32 = arith.constant 0 : i32
    %c0_i32_0 = arith.constant 0 : i32
    return %arg0, %c0_i32 : i32, i32
  }
  func.func @transform_1(%arg0: i32) -> (i32, i32) {
    %c0_i32 = arith.constant 0 : i32
    %c0_i32_0 = arith.constant 0 : i32
    %c0_i32_1 = arith.constant 0 : i32
    return %c0_i32, %c0_i32_0 : i32, i32
  }
  func.func @transform_2(%arg0: i32) -> (i32, i32) {
    %c0_i32 = arith.constant 0 : i32
    %c0_i32_0 = arith.constant 0 : i32
    %c0_i32_1 = arith.constant 0 : i32
    return %c0_i32, %c0_i32_0 : i32, i32
  }
  func.func @transform_3(%arg0: i32) -> (i32, i32) {
    %c0_i32 = arith.constant 0 : i32
    %c0_i32_0 = arith.constant 0 : i32
    %c0_i32_1 = arith.constant 0 : i32
    return %c0_i32, %c0_i32_0 : i32, i32
  }
  func.func @transform_4(%arg0: i32) -> (i32, i32) {
    %c0_i32 = arith.constant 0 : i32
    %c0_i32_0 = arith.constant 0 : i32
    %c0_i32_1 = arith.constant 0 : i32
    return %c0_i32, %c0_i32_0 : i32, i32
  }
  func.func @transform_5(%arg0: i32) -> (i32, i32) {
    %c0_i32 = arith.constant 0 : i32
    %c0_i32_0 = arith.constant 0 : i32
    return %arg0, %c0_i32 : i32, i32
  }
}

</mosaic_0001>

<llo_original>
// kernel: tpu_custom_call.1
$region0: #{tpu_custom_call.1}
  #allocation0 [shape = 'u32[]', space=smem, size = 0x4, offset = 0x4, fixed_abs, tag = 'smem constant byte address 0x4 - core index']
  #allocation1 [shape = 'u32[144,128]{1,0:T(1,128)}', space=vmem, size = 0x12000, scoped, tag = 'internal scratch']
  #allocation2 [shape = 'f32[1,1]{1,0:T(1,128)S(1)}', space=vmem, size = 0x200, scoped, tag = 'scoped memory for tpu_custom_call.1']
  %s0 = inlined_call_operand.hbm [shape: bf16[8,16], index: 0, kind: input, shape index: {}]
  %s1 = inlined_call_operand.hbm [shape: bf16[16,32], index: 1, kind: input, shape index: {}]
  %s2 = inlined_call_operand.vmem [shape: f32[1,32], index: 2, kind: input, shape index: {}]
  %s3 = inlined_call_operand.vmem [shape: f32[1,32], index: 3, kind: input, shape index: {}]
  %s4 = inlined_call_operand.<no memory space> [shape: f32[1,1], index: 4, kind: input, shape index: {}]
  %s5 = inlined_call_operand.vmem [shape: f32[8,1], index: 5, kind: output, shape index: {}]
  %s6 = sld [smem:[#allocation0]]
  $region38: #{tpu_custom_call.1} parent=0
    _
  %s8 = ssub.s32 1, %s6
  %s9 = scalar_select 0, %s8, %s6
  %v10 = vstv %s4
  %11 = vst [vmem:[#allocation2] sm:$0x1] %v10
  $region1: #{tpu_custom_call.1} parent=0
    #allocation3 [shape = 'u8[2048]{0}', space=vmem, size = 0x800, scoped, tag = 'input window, operand 0, single buffered']
    #allocation4 [shape = 's32[1]{0}', space=sflag, size = 0x4, scoped, tag = 'scoped memory for tpu_custom_call.1']
    #allocation5 [shape = 'u8[4096]{0}', space=vmem, size = 0x1000, scoped, tag = 'input window, operand 1, single buffered']
    #allocation6 [shape = 's32[1]{0}', space=sflag, size = 0x4, scoped, tag = 'scoped memory for tpu_custom_call.1']
    %12 = vsyncpa [#allocation4], 0
    %13 = vsyncpa [#allocation6], 0
    // Predicated region
    $region2: #{tpu_custom_call.1} parent=1 // pred_check
      _
    $region3: #{tpu_custom_call.1} parent=1 // pred_check_branch
      %15 = sbr.rel (0) target = $region5
    $region4: #{tpu_custom_call.1} parent=1 // pred_region
      %s17 = ssub.s32 64, 64
      %18 = vsyncadd [#allocation4], %s17
      %s20 = sshll.u32 [#allocation3], 4
      %s21 = int_to_ptr.vmem [resolvable:$true] %s20
      %23 = dma.hbm_to_vmem [thread:$0]  %s0, 64, %s21, [#allocation4]
    $region5: #{tpu_custom_call.1} parent=1 // pred_fallthru
      _
    // Predicated region
    $region6: #{tpu_custom_call.1} parent=1 // pred_check
      _
    $region7: #{tpu_custom_call.1} parent=1 // pred_check_branch
      %25 = sbr.rel (0) target = $region9
    $region8: #{tpu_custom_call.1} parent=1 // pred_region
      %s27 = ssub.s32 128, 128
      %28 = vsyncadd [#allocation6], %s27
      %s29 = sshll.u32 [#allocation5], 4
      %s30 = int_to_ptr.vmem [resolvable:$true] %s29
      %35 = dma.hbm_to_vmem [thread:$0]  %s1, 128, %s30, [#allocation6], 64, 64, 4
    $region9: #{tpu_custom_call.1} parent=1 // pred_fallthru
      _
    // Predicated region
    $region10: #{tpu_custom_call.1} parent=1 // pred_check
      _
    $region11: #{tpu_custom_call.1} parent=1 // pred_check_branch
      %37 = sbr.rel (0) target = $region13
    $region12: #{tpu_custom_call.1} parent=1 // pred_region
      _
    $region13: #{tpu_custom_call.1} parent=1 // pred_fallthru
      _
    // Predicated region
    $region14: #{tpu_custom_call.1} parent=1 // pred_check
      _
    $region15: #{tpu_custom_call.1} parent=1 // pred_check_branch
      %39 = sbr.rel (0) target = $region17
    $region16: #{tpu_custom_call.1} parent=1 // pred_region
      _
    $region17: #{tpu_custom_call.1} parent=1 // pred_fallthru
      _
    // Predicated region
    $region18: #{tpu_custom_call.1} parent=1 // pred_check
      _
    $region19: #{tpu_custom_call.1} parent=1 // pred_check_branch
      %41 = sbr.rel (0) target = $region21
    $region20: #{tpu_custom_call.1} parent=1 // pred_region
      _
    $region21: #{tpu_custom_call.1} parent=1 // pred_fallthru
      _
    // Predicated region
    $region22: #{tpu_custom_call.1} parent=1 // pred_check
      _
    $region23: #{tpu_custom_call.1} parent=1 // pred_check_branch
      %43 = sbr.rel (0) target = $region25
    $region24: #{tpu_custom_call.1} parent=1 // pred_region
      %44 = dma.done [#allocation4], 64
    $region25: #{tpu_custom_call.1} parent=1 // pred_fallthru
      _
    // Predicated region
    $region26: #{tpu_custom_call.1} parent=1 // pred_check
      _
    $region27: #{tpu_custom_call.1} parent=1 // pred_check_branch
      %46 = sbr.rel (0) target = $region29
    $region28: #{tpu_custom_call.1} parent=1 // pred_region
      %47 = dma.done [#allocation6], 128
    $region29: #{tpu_custom_call.1} parent=1 // pred_fallthru
      _
    %v49 = vld [vmem:[#allocation3] sm:$0xf]
    %v50 = vld [vmem:[#allocation5] sm:$0xf]
    %v51 = vld [vmem:[#allocation5 + $0x4] sm:$0xf]
    %v52 = vld [vmem:[%s2] sm:$0x1]
    %v54 = vlaneseq
    %v55 = vshrl.u32 %v54, 7
    %v56 = vsub.s32 0, %v55
    %v57 = vrot.slane %v52, %v56
    %v61 = vunpack.c.l.b16 %v50
    %v62 = vunpack.c.l.b16 %v51
    %v63 = vpack.c.b16 %v62, %v61
    %vm65 = vcmask 130048
    %v67 = vsel %vm65, %v49, 0
    %69 = vmatprep.subr.bf16.mxu0 0
    %70 = vmatpush1.bf16.msra.mxu0 %v63
    %71 = vmatprep.subr.bf16.mxu0 0
    %72 = vmatpush1.bf16.msra.mxu0 0
    %73 = vmatprep.subr.bf16.mxu0 0
    %74 = vmatpush1.bf16.msra.mxu0 0
    %75 = vmatprep.subr.bf16.mxu0 0
    %76 = vmatpush1.bf16.msra.mxu0 0
    %77 = vmatprep.subr.bf16.mxu0 0
    %78 = vmatpush1.bf16.msra.mxu0 0
    %79 = vmatprep.subr.bf16.mxu0 0
    %80 = vmatpush1.bf16.msra.mxu0 0
    %81 = vmatprep.subr.bf16.mxu0 0
    %82 = vmatpush1.bf16.msra.mxu0 0
    %83 = vmatprep.subr.bf16.mxu0 0
    %84 = vmatpush1.bf16.msra.mxu0 0
    %85 = vmatprep.subr.bf16.mxu0 0
    %86 = vmatpush1.bf16.msra.mxu0 0
    %87 = vmatprep.subr.bf16.mxu0 0
    %88 = vmatpush1.bf16.msra.mxu0 0
    %89 = vmatprep.subr.bf16.mxu0 0
    %90 = vmatpush1.bf16.msra.mxu0 0
    %91 = vmatprep.subr.bf16.mxu0 0
    %92 = vmatpush1.bf16.msra.mxu0 0
    %93 = vmatprep.subr.bf16.mxu0 0
    %94 = vmatpush1.bf16.msra.mxu0 0
    %95 = vmatprep.subr.bf16.mxu0 0
    %96 = vmatpush1.bf16.msra.mxu0 0
    %97 = vmatprep.subr.bf16.mxu0 0
    %98 = vmatpush1.bf16.msra.mxu0 0
    %99 = vmatprep.subr.bf16.mxu0 0
    %100 = vmatpush1.bf16.msra.mxu0 0
    %101 = vmatprep.mubr.bf16.mxu0 0
    %102 = vmatmul.mubr.bf16.gmra.mrb[0].mxu0 %v67
    %v103 = vpop.f32.mrb[0].mxu0
    %v104 = vadd.f32 %v57, %v103
    %v105 = vpop.f32.mrb[0].mxu0
    %v106 = vpop.f32.mrb[0].mxu0
    %v107 = vpop.f32.mrb[0].mxu0
    %108 = vdwg.mxu0
    %v109 = vmax.f32 %v104, 0.0
    %v110 = vld [vmem:[%s3] sm:$0x1]
    %v112 = vlaneseq
    %v113 = vshrl.u32 %v112, 7
    %v114 = vsub.s32 0, %v113
    %v115 = vrot.slane %v110, %v114
    %v117 = vmul.f32 %v109, %v115
    %vm118 = vcmask 261120
    %v119 = vsel %vm118, %v117, 0.0
    %120 = vadd.xlane.f32.xlu0 %v119
    %v121 = vpop.xlane.xlu0 %120
    %v122 = vld [vmem:[#allocation2] sm:$0x1]
    %v124 = vlaneseq
    %v125 = vshrl.u32 %v124, 7
    %v126 = vsub.s32 0, %v125
    %v127 = vrot.slane %v122, %v126
    %v129 = vadd.f32 %v121, %v127
    %v130 = vxor.u32 %v129, 2147483648
    %v131 = vmul.f32 %v130, 1.442695
    %v132 = vpow.pop %v131
    %v133 = vadd.f32 %v132, 1.0
    %v134 = vrcp.pop %v133
    %v135 = vmul.f32 1.0, %v134
    %vm136 = vcmask 7168
    %137 = vst.msk [vmem:[%s5] sm:$0xff] %vm136, %v135
    // Predicated region
    $region30: #{tpu_custom_call.1} parent=1 // pred_check
      _
    $region31: #{tpu_custom_call.1} parent=1 // pred_check_branch
      %139 = sbr.rel (0) target = $region33
    $region32: #{tpu_custom_call.1} parent=1 // pred_region
      _
    $region33: #{tpu_custom_call.1} parent=1 // pred_fallthru
      _
    // Predicated region
    $region34: #{tpu_custom_call.1} parent=1 // pred_check
      _
    $region35: #{tpu_custom_call.1} parent=1 // pred_check_branch
      %141 = sbr.rel (0) target = $region37
    $region36: #{tpu_custom_call.1} parent=1 // pred_region
      _
    $region37: #{tpu_custom_call.1} parent=1 // pred_fallthru
      _
    %142 = vsyncpa [#allocation4], 1
    %143 = vsyncpa [#allocation6], 1

</llo_original>
